<compile_context>
chip_gen: v5e
topology: v5e:2x2
jax: 0.10.0
libtpu: 0.0.40
codegen_flags: <defaults>
</compile_context>

<pallas_src>
import functools

import jax
import jax.numpy as jnp
from jax.experimental import pallas as pl
from jax.experimental.pallas import tpu as pltpu


def _round_up(x, m):
    return ((x + m - 1) // m) * m


def _head_kernel(
    hs_ref,             # [TILE, D_pad]               activation tile
    wf1_ref, bf1_ref,   # [D_pad, C1_pad + D_pad], [1, C1_pad + D_pad]  fused class|mlp0
    w2_ref, b2_ref,     # [D_pad, D_pad], [1, D_pad]                    bbox_embed.layers[1]
    w3_ref, b3_ref,     # [D_pad, BOX_PAD], [1, BOX_PAD]                bbox_embed.layers[2] (padded)
    logits_ref,         # [TILE, C1_pad]   padded pred_logits slab
    boxes_ref,          # [TILE, BOX_PAD]  padded sigmoid(pred_boxes) slab
    *,
    c1_pad,
    compute_dtype,
):
    x = hs_ref[...].astype(compute_dtype)

    # Fused (class_embed | bbox layer 0) matmul: one wide MXU pass, f32 acc.
    y = jnp.dot(x, wf1_ref[...], preferred_element_type=jnp.float32) + bf1_ref[...]

    # Classification logits: lane-dense padded slab (real C1 cols sliced outside).
    logits_ref[...] = y[:, :c1_pad].astype(logits_ref.dtype)

    # Bbox MLP: ReLU on hidden layers, sigmoid at the end (f32 elementwise).
    h = jnp.maximum(y[:, c1_pad:], 0.0)
    h = jnp.dot(h.astype(compute_dtype), w2_ref[...],
                preferred_element_type=jnp.float32) + b2_ref[...]
    h = jnp.maximum(h, 0.0)
    b = jnp.dot(h.astype(compute_dtype), w3_ref[...],
                preferred_element_type=jnp.float32) + b3_ref[...]
    boxes_ref[...] = jax.nn.sigmoid(b).astype(boxes_ref.dtype)


def object_detection_head(hs, params, *, compute_dtype=jnp.float32, tile_rows=512):
    """hs: [B, Q, D] float32. params: dict of weights/biases (see init_params).

    compute_dtype=jnp.bfloat16 feeds bf16 to the MXU (f32 accumulation) for
    v6e/v7x peak throughput; default f32 keeps bit-tight numerics.
    tile_rows is capped so double-buffered tiles + resident weights fit v7x's
    smaller (64 MiB phys / 32 MiB scoped) VMEM comfortably.
    """
    B, Q, D = hs.shape
    N = B * Q
    C1 = params["wc"].shape[1]          # num_classes + 1

    D_pad = _round_up(D, 128)
    C1_pad = _round_up(C1, 128)
    BOX_PAD = 128                       # pad the 4-wide box output to a full lane group

    tile = min(tile_rows, _round_up(N, 8))
    n_pad = _round_up(N, tile)

    f32 = jnp.float32

    # ---- pack / zero-pad weights (class head fused with bbox layer 0) ----
    wf1 = jnp.zeros((D_pad, C1_pad + D_pad), f32)
    wf1 = wf1.at[:D, :C1].set(params["wc"])
    wf1 = wf1.at[:D, C1_pad:C1_pad + D].set(params["w1"])
    bf1 = jnp.zeros((1, C1_pad + D_pad), f32)
    bf1 = bf1.at[:, :C1].set(params["bc"])
    bf1 = bf1.at[:, C1_pad:C1_pad + D].set(params["b1"])

    w2 = jnp.zeros((D_pad, D_pad), f32).at[:D, :D].set(params["w2"])
    b2 = jnp.zeros((1, D_pad), f32).at[:, :D].set(params["b2"])
    w3 = jnp.zeros((D_pad, BOX_PAD), f32).at[:D, :4].set(params["w3"])
    b3 = jnp.zeros((1, BOX_PAD), f32).at[:, :4].set(params["b3"])

    # Store MXU operands in the compute dtype (halves weight DMA bytes for bf16).
    wf1 = wf1.astype(compute_dtype)
    w2 = w2.astype(compute_dtype)
    w3 = w3.astype(compute_dtype)

    # ---- pad activations: rows to a tile multiple, features to lane multiple ----
    hs_flat = hs.reshape(N, D)
    hs_pad = jnp.zeros((n_pad, D_pad), hs.dtype).at[:N, :D].set(hs_flat)

    grid = (n_pad // tile,)

    # ---- advisory cost estimate for the XLA scheduler ----
    flops = 2 * n_pad * D_pad * (C1_pad + 2 * D_pad + BOX_PAD)
    weight_bytes = (
        wf1.size * wf1.dtype.itemsize
        + w2.size * w2.dtype.itemsize
        + w3.size * w3.dtype.itemsize
        + (bf1.size + b2.size + b3.size) * 4
    )
    bytes_accessed = (
        hs_pad.size * hs_pad.dtype.itemsize
        + weight_bytes
        + n_pad * (C1_pad + BOX_PAD) * 4
    )
    cost = pl.CostEstimate(
        flops=flops,
        transcendentals=n_pad * BOX_PAD,   # sigmoid -> exp on the EUP
        bytes_accessed=bytes_accessed,
    )

    kernel = functools.partial(_head_kernel, c1_pad=C1_pad, compute_dtype=compute_dtype)

    logits_pad, boxes_pad = pl.pallas_call(
        kernel,
        grid=grid,
        in_specs=[
            pl.BlockSpec((tile, D_pad), lambda i: (i, 0)),                 # hs tile
            pl.BlockSpec((D_pad, C1_pad + D_pad), lambda i: (0, 0)),       # fused W
            pl.BlockSpec((1, C1_pad + D_pad), lambda i: (0, 0)),           # fused b
            pl.BlockSpec((D_pad, D_pad), lambda i: (0, 0)),                # w2
            pl.BlockSpec((1, D_pad), lambda i: (0, 0)),                    # b2
            pl.BlockSpec((D_pad, BOX_PAD), lambda i: (0, 0)),              # w3 (padded)
            pl.BlockSpec((1, BOX_PAD), lambda i: (0, 0)),                  # b3 (padded)
        ],
        out_specs=(
            pl.BlockSpec((tile, C1_pad), lambda i: (i, 0)),
            pl.BlockSpec((tile, BOX_PAD), lambda i: (i, 0)),
        ),
        out_shape=(
            jax.ShapeDtypeStruct((n_pad, C1_pad), jnp.float32),
            jax.ShapeDtypeStruct((n_pad, BOX_PAD), jnp.float32),
        ),
        compiler_params=pltpu.CompilerParams(
            dimension_semantics=("parallel",),     # megacore-shard row tiles on v7x
        ),
        cost_estimate=cost,
    )(hs_pad, wf1, bf1, w2, b2, w3, b3)

    logits = logits_pad[:N, :C1].reshape(B, Q, C1)
    boxes = boxes_pad[:N, :4].reshape(B, Q, 4)
    return {"pred_logits": logits, "pred_boxes": boxes}


def init_params(key, num_classes, latent_dim):
    """Deterministic synthetic parameter init (shapes match the PyTorch module)."""
    ks = jax.random.split(key, 8)
    C1 = num_classes + 1
    scale = 0.05

    def lin(kw, kb, n_in, n_out):
        w = scale * jax.random.normal(kw, (n_in, n_out), dtype=jnp.float32)
        b = scale * jax.random.normal(kb, (1, n_out), dtype=jnp.float32)
        return w, b

    wc, bc = lin(ks[0], ks[1], latent_dim, C1)          # class_embed
    w1, b1 = lin(ks[2], ks[3], latent_dim, latent_dim)  # bbox_embed.layers[0]
    w2, b2 = lin(ks[4], ks[5], latent_dim, latent_dim)  # bbox_embed.layers[1]
    w3, b3 = lin(ks[6], ks[7], latent_dim, 4)           # bbox_embed.layers[2]
    return dict(wc=wc, bc=bc, w1=w1, b1=b1, w2=w2, b2=b2, w3=w3, b3=b3)


def _reference(hs, p):
    """Pure-JAX reference for correctness check."""
    x = hs
    logits = x @ p["wc"] + p["bc"]
    h = jax.nn.relu(x @ p["w1"] + p["b1"])
    h = jax.nn.relu(h @ p["w2"] + p["b2"])
    boxes = jax.nn.sigmoid(h @ p["w3"] + p["b3"])
    return logits, boxes


if __name__ == "__main__":
    key = jax.random.PRNGKey(0)
    k_hs, k_p = jax.random.split(key)

    batch = 2
    num_queries = 8      # num_latents
    latent_dim = 32
    num_classes = 7      # -> num_classes + 1 = 8 logits

    hs = jax.random.normal(k_hs, (batch, num_queries, latent_dim), dtype=jnp.float32)
    params = init_params(k_p, num_classes, latent_dim)

    out = object_detection_head(hs, params)          # f32 compute path (exact)
    jax.block_until_ready(out)

    ref_logits, ref_boxes = _reference(hs, params)
    assert jnp.allclose(out["pred_logits"], ref_logits, atol=1e-5, rtol=1e-5)
    assert jnp.allclose(out["pred_boxes"], ref_boxes, atol=1e-5, rtol=1e-5)
    assert out["pred_logits"].shape == (batch, num_queries, num_classes + 1)
    assert out["pred_boxes"].shape == (batch, num_queries, 4)

    # bf16 MXU path (v6e/v7x peak throughput), relaxed tolerance.
    out_bf16 = object_detection_head(hs, params, compute_dtype=jnp.bfloat16)
    jax.block_until_ready(out_bf16)
    assert jnp.allclose(out_bf16["pred_logits"], ref_logits, atol=2e-2, rtol=2e-2)
    assert jnp.allclose(out_bf16["pred_boxes"], ref_boxes, atol=2e-2, rtol=2e-2)

    print("KERNEL_OK")
</pallas_src>

<mosaic_0001>
module attributes {stable_mosaic.version = 11 : i64} {
  func.func @_head_kernel(%arg0: i32, %arg1: memref<16x128xf32, #tpu.memory_space<vmem>>, %arg2: memref<128x256xf32, #tpu.memory_space<vmem>>, %arg3: memref<1x256xf32, #tpu.memory_space<vmem>>, %arg4: memref<128x128xf32, #tpu.memory_space<vmem>>, %arg5: memref<1x128xf32, #tpu.memory_space<vmem>>, %arg6: memref<128x128xf32, #tpu.memory_space<vmem>>, %arg7: memref<1x128xf32, #tpu.memory_space<vmem>>, %arg8: memref<16x128xf32, #tpu.memory_space<vmem>>, %arg9: memref<16x128xf32, #tpu.memory_space<vmem>>) attributes {dimension_semantics = [#tpu.dimension_semantics<parallel>], iteration_bounds = array<i64: 1>, scalar_prefetch = 0 : i64, scratch_operands = 0 : i64, tpu.core_type = #tpu.core_type<tc>, window_params = [{transform_indices = @transform_0, window_bounds = array<i64: 16, 128>}, {pipeline_mode = #tpu.pipeline_mode<synchronous>, transform_indices = @transform_1, window_bounds = array<i64: 128, 256>}, {pipeline_mode = #tpu.pipeline_mode<synchronous>, transform_indices = @transform_2, window_bounds = array<i64: 1, 256>}, {pipeline_mode = #tpu.pipeline_mode<synchronous>, transform_indices = @transform_3, window_bounds = array<i64: 128, 128>}, {pipeline_mode = #tpu.pipeline_mode<synchronous>, transform_indices = @transform_4, window_bounds = array<i64: 1, 128>}, {pipeline_mode = #tpu.pipeline_mode<synchronous>, transform_indices = @transform_5, window_bounds = array<i64: 128, 128>}, {pipeline_mode = #tpu.pipeline_mode<synchronous>, transform_indices = @transform_6, window_bounds = array<i64: 1, 128>}, {transform_indices = @transform_7, window_bounds = array<i64: 16, 128>}, {transform_indices = @transform_8, window_bounds = array<i64: 16, 128>}]} {
    %c0 = arith.constant 0 : index
    %c0_0 = arith.constant 0 : index
    %0 = vector.load %arg1[%c0, %c0_0] : memref<16x128xf32, #tpu.memory_space<vmem>>, vector<16x128xf32>
    %c0_1 = arith.constant 0 : index
    %c0_2 = arith.constant 0 : index
    %1 = vector.load %arg2[%c0_1, %c0_2] : memref<128x256xf32, #tpu.memory_space<vmem>>, vector<128x256xf32>
    %cst = arith.constant dense<0.000000e+00> : vector<16x256xf32>
    %2 = tpu.matmul %0, %1, %cst {dimension_numbers = #tpu.dot_dimension_numbers<[1], [0], [0], [1], [0, 0, 1, 1], [], []>} : vector<16x128xf32>, vector<128x256xf32>, vector<16x256xf32> -> vector<16x256xf32>
    %c0_3 = arith.constant 0 : index
    %c0_4 = arith.constant 0 : index
    %3 = vector.load %arg3[%c0_3, %c0_4] : memref<1x256xf32, #tpu.memory_space<vmem>>, vector<1x256xf32>
    %4 = vector.broadcast %3 : vector<1x256xf32> to vector<16x256xf32>
    %5 = arith.addf %2, %4 : vector<16x256xf32>
    %6 = vector.extract_strided_slice %5 {offsets = [0, 0], sizes = [16, 128], strides = [1, 1]} : vector<16x256xf32> to vector<16x128xf32>
    %c0_5 = arith.constant 0 : index
    %c0_6 = arith.constant 0 : index
    %7 = vector.load %arg8[%c0_5, %c0_6] : memref<16x128xf32, #tpu.memory_space<vmem>>, vector<16x128xf32>
    tpu.vector_store %arg8[%c0_5, %c0_6], %6 {strides = array<i32>} : memref<16x128xf32, #tpu.memory_space<vmem>>, vector<16x128xf32>,
    %8 = vector.extract_strided_slice %5 {offsets = [0, 128], sizes = [16, 128], strides = [1, 1]} : vector<16x256xf32> to vector<16x128xf32>
    %cst_7 = arith.constant 0.000000e+00 : f32
    %9 = vector.broadcast %cst_7 : f32 to vector<16x128xf32>
    %10 = arith.maximumf %8, %9 : vector<16x128xf32>
    %c0_8 = arith.constant 0 : index
    %c0_9 = arith.constant 0 : index
    %11 = vector.load %arg4[%c0_8, %c0_9] : memref<128x128xf32, #tpu.memory_space<vmem>>, vector<128x128xf32>
    %cst_10 = arith.constant dense<0.000000e+00> : vector<16x128xf32>
    %12 = tpu.matmul %10, %11, %cst_10 {dimension_numbers = #tpu.dot_dimension_numbers<[1], [0], [0], [1], [0, 0, 1, 1], [], []>} : vector<16x128xf32>, vector<128x128xf32>, vector<16x128xf32> -> vector<16x128xf32>
    %c0_11 = arith.constant 0 : index
    %c0_12 = arith.constant 0 : index
    %13 = vector.load %arg5[%c0_11, %c0_12] : memref<1x128xf32, #tpu.memory_space<vmem>>, vector<1x128xf32>
    %14 = vector.broadcast %13 : vector<1x128xf32> to vector<16x128xf32>
    %15 = arith.addf %12, %14 : vector<16x128xf32>
    %cst_13 = arith.constant 0.000000e+00 : f32
    %16 = vector.broadcast %cst_13 : f32 to vector<16x128xf32>
    %17 = arith.maximumf %15, %16 : vector<16x128xf32>
    %c0_14 = arith.constant 0 : index
    %c0_15 = arith.constant 0 : index
    %18 = vector.load %arg6[%c0_14, %c0_15] : memref<128x128xf32, #tpu.memory_space<vmem>>, vector<128x128xf32>
    %cst_16 = arith.constant dense<0.000000e+00> : vector<16x128xf32>
    %19 = tpu.matmul %17, %18, %cst_16 {dimension_numbers = #tpu.dot_dimension_numbers<[1], [0], [0], [1], [0, 0, 1, 1], [], []>} : vector<16x128xf32>, vector<128x128xf32>, vector<16x128xf32> -> vector<16x128xf32>
    %c0_17 = arith.constant 0 : index
    %c0_18 = arith.constant 0 : index
    %20 = vector.load %arg7[%c0_17, %c0_18] : memref<1x128xf32, #tpu.memory_space<vmem>>, vector<1x128xf32>
    %21 = vector.broadcast %20 : vector<1x128xf32> to vector<16x128xf32>
    %22 = arith.addf %19, %21 : vector<16x128xf32>
    %23 = arith.negf %22 : vector<16x128xf32>
    %24 = math.exp %23 : vector<16x128xf32>
    %cst_19 = arith.constant 1.000000e+00 : f32
    %25 = vector.broadcast %cst_19 : f32 to vector<16x128xf32>
    %26 = arith.addf %25, %24 : vector<16x128xf32>
    %27 = arith.divf %25, %26 : vector<16x128xf32>
    %c0_20 = arith.constant 0 : index
    %c0_21 = arith.constant 0 : index
    %28 = vector.load %arg9[%c0_20, %c0_21] : memref<16x128xf32, #tpu.memory_space<vmem>>, vector<16x128xf32>
    tpu.vector_store %arg9[%c0_20, %c0_21], %27 {strides = array<i32>} : memref<16x128xf32, #tpu.memory_space<vmem>>, vector<16x128xf32>,
    return
  }
  func.func @transform_0(%arg0: i32) -> (i32, i32) {
    %c0_i32 = arith.constant 0 : i32
    %c0_i32_0 = arith.constant 0 : i32
    return %arg0, %c0_i32 : i32, i32
  }
  func.func @transform_1(%arg0: i32) -> (i32, i32) {
    %c0_i32 = arith.constant 0 : i32
    %c0_i32_0 = arith.constant 0 : i32
    %c0_i32_1 = arith.constant 0 : i32
    return %c0_i32, %c0_i32_0 : i32, i32
  }
  func.func @transform_2(%arg0: i32) -> (i32, i32) {
    %c0_i32 = arith.constant 0 : i32
    %c0_i32_0 = arith.constant 0 : i32
    %c0_i32_1 = arith.constant 0 : i32
    return %c0_i32, %c0_i32_0 : i32, i32
  }
  func.func @transform_3(%arg0: i32) -> (i32, i32) {
    %c0_i32 = arith.constant 0 : i32
    %c0_i32_0 = arith.constant 0 : i32
    %c0_i32_1 = arith.constant 0 : i32
    return %c0_i32, %c0_i32_0 : i32, i32
  }
  func.func @transform_4(%arg0: i32) -> (i32, i32) {
    %c0_i32 = arith.constant 0 : i32
    %c0_i32_0 = arith.constant 0 : i32
    %c0_i32_1 = arith.constant 0 : i32
    return %c0_i32, %c0_i32_0 : i32, i32
  }
  func.func @transform_5(%arg0: i32) -> (i32, i32) {
    %c0_i32 = arith.constant 0 : i32
    %c0_i32_0 = arith.constant 0 : i32
    %c0_i32_1 = arith.constant 0 : i32
    return %c0_i32, %c0_i32_0 : i32, i32
  }
  func.func @transform_6(%arg0: i32) -> (i32, i32) {
    %c0_i32 = arith.constant 0 : i32
    %c0_i32_0 = arith.constant 0 : i32
    %c0_i32_1 = arith.constant 0 : i32
    return %c0_i32, %c0_i32_0 : i32, i32
  }
  func.func @transform_7(%arg0: i32) -> (i32, i32) {
    %c0_i32 = arith.constant 0 : i32
    %c0_i32_0 = arith.constant 0 : i32
    return %arg0, %c0_i32 : i32, i32
  }
  func.func @transform_8(%arg0: i32) -> (i32, i32) {
    %c0_i32 = arith.constant 0 : i32
    %c0_i32_0 = arith.constant 0 : i32
    return %arg0, %c0_i32 : i32, i32
  }
}

</mosaic_0001>

<llo_original>
// kernel: tpu_custom_call.1
$region0: #{tpu_custom_call.1}
  #allocation0 [shape = 'u32[]', space=smem, size = 0x4, offset = 0x4, fixed_abs, tag = 'smem constant byte address 0x4 - core index']
  #allocation1 [shape = 'u32[72,128]{1,0:T(1,128)}', space=vmem, size = 0x9000, scoped, tag = 'internal scratch']
  %s0 = inlined_call_operand.hbm [shape: f32[16,128], index: 0, kind: input, shape index: {}]
  %s1 = inlined_call_operand.hbm [shape: f32[128,256], index: 1, kind: input, shape index: {}]
  %s2 = inlined_call_operand.hbm [shape: f32[1,256], index: 2, kind: input, shape index: {}]
  %s3 = inlined_call_operand.hbm [shape: f32[128,128], index: 3, kind: input, shape index: {}]
  %s4 = inlined_call_operand.vmem [shape: f32[1,128], index: 4, kind: input, shape index: {}]
  %s5 = inlined_call_operand.hbm [shape: f32[128,128], index: 5, kind: input, shape index: {}]
  %s6 = inlined_call_operand.vmem [shape: f32[1,128], index: 6, kind: input, shape index: {}]
  %s7 = inlined_call_operand.hbm [shape: f32[16,128], index: 7, kind: output, shape index: {0}]
  %s8 = inlined_call_operand.hbm [shape: f32[16,128], index: 8, kind: output, shape index: {1}]
  %9 = xla_tuple %s7, %s8
  %s10 = sld [smem:[#allocation0]]
  $region66: #{tpu_custom_call.1} parent=0
    _
  %s12 = ssub.s32 1, %s10
  %s13 = scalar_select 0, %s12, %s10
  $region1: #{tpu_custom_call.1} parent=0
    #allocation2 [shape = 'u8[8192]{0}', space=vmem, size = 0x2000, scoped, tag = 'input window, operand 0, single buffered']
    #allocation3 [shape = 's32[1]{0}', space=sflag, size = 0x4, scoped, tag = 'scoped memory for tpu_custom_call.1']
    #allocation4 [shape = 's32[1]{0}', space=sflag, size = 0x4, scoped, tag = 'scoped memory for tpu_custom_call.1']
    #allocation5 [shape = 'u8[131072]{0}', space=vmem, size = 0x20000, scoped, tag = 'input window, operand 1, single buffered']
    #allocation6 [shape = 's32[1]{0}', space=sflag, size = 0x4, scoped, tag = 'scoped memory for tpu_custom_call.1']
    #allocation7 [shape = 'u8[1024]{0}', space=vmem, size = 0x400, scoped, tag = 'input window, operand 2, single buffered']
    #allocation8 [shape = 'u8[65536]{0}', space=vmem, size = 0x10000, scoped, tag = 'input window, operand 3, single buffered']
    #allocation9 [shape = 's32[1]{0}', space=sflag, size = 0x4, scoped, tag = 'scoped memory for tpu_custom_call.1']
    #allocation10 [shape = 'u8[65536]{0}', space=vmem, size = 0x10000, scoped, tag = 'input window, operand 5, single buffered']
    #allocation11 [shape = 'u8[8192]{0}', space=vmem, size = 0x2000, scoped, tag = 'output window, operand 0, single buffered']
    #allocation12 [shape = 'u8[8192]{0}', space=vmem, size = 0x2000, scoped, tag = 'output window, operand 1, single buffered']
    #allocation13 [shape = 's32[1]{0}', space=sflag, size = 0x4, scoped, tag = 'scoped memory for tpu_custom_call.1']
    %14 = vsyncpa [#allocation3], 0
    %15 = vsyncpa [#allocation6], 0
    %16 = vsyncpa [#allocation9], 0
    %17 = vsyncpa [#allocation4], 0
    %18 = vsyncpa [#allocation13], 0
    // Predicated region
    $region2: #{tpu_custom_call.1} parent=1 // pred_check
      _
    $region3: #{tpu_custom_call.1} parent=1 // pred_check_branch
      %20 = sbr.rel (0) target = $region5
    $region4: #{tpu_custom_call.1} parent=1 // pred_region
      %22 = vsyncadd [#allocation3], 0
      %s23 = sshll.u32 %s0, 4
      %s24 = int_to_ptr.hbm [resolvable:$true] %s23
      %s25 = sshll.u32 [#allocation2], 4
      %s26 = int_to_ptr.vmem [resolvable:$true] %s25
      %31 = dma.hbm_to_vmem [thread:$0]  %s24, 256, %s26, [#allocation3], 128, 128, 8
    $region5: #{tpu_custom_call.1} parent=1 // pred_fallthru
      _
    // Predicated region
    $region6: #{tpu_custom_call.1} parent=1 // pred_check
      _
    $region7: #{tpu_custom_call.1} parent=1 // pred_check_branch
      %33 = sbr.rel (0) target = $region9
    $region8: #{tpu_custom_call.1} parent=1 // pred_region
      %35 = vsyncadd [#allocation6], 0
      %s36 = sshll.u32 %s1, 4
      %s37 = int_to_ptr.hbm [resolvable:$true] %s36
      %s38 = sshll.u32 [#allocation5], 4
      %s39 = int_to_ptr.vmem [resolvable:$true] %s38
      %44 = dma.hbm_to_vmem [thread:$0]  %s37, 4096, %s39, [#allocation6], 256, 256, 16
    $region9: #{tpu_custom_call.1} parent=1 // pred_fallthru
      _
    // Predicated region
    $region10: #{tpu_custom_call.1} parent=1 // pred_check
      _
    $region11: #{tpu_custom_call.1} parent=1 // pred_check_branch
      %46 = sbr.rel (0) target = $region13
    $region12: #{tpu_custom_call.1} parent=1 // pred_region
      %48 = vsyncadd [#allocation6], 0
      %s50 = sshll.u32 %s2, 4
      %s51 = int_to_ptr.hbm [resolvable:$true] %s50
      %s52 = sshll.u32 [#allocation7], 4
      %s53 = int_to_ptr.vmem [resolvable:$true] %s52
      %55 = dma.hbm_to_vmem [thread:$0]  %s51, 32, %s53, [#allocation6]
    $region13: #{tpu_custom_call.1} parent=1 // pred_fallthru
      _
    // Predicated region
    $region14: #{tpu_custom_call.1} parent=1 // pred_check
      _
    $region15: #{tpu_custom_call.1} parent=1 // pred_check_branch
      %57 = sbr.rel (0) target = $region17
    $region16: #{tpu_custom_call.1} parent=1 // pred_region
      %59 = vsyncadd [#allocation9], 0
      %s60 = sshll.u32 %s3, 4
      %s61 = int_to_ptr.hbm [resolvable:$true] %s60
      %s62 = sshll.u32 [#allocation8], 4
      %s63 = int_to_ptr.vmem [resolvable:$true] %s62
      %68 = dma.hbm_to_vmem [thread:$0]  %s61, 2048, %s63, [#allocation9], 128, 128, 8
    $region17: #{tpu_custom_call.1} parent=1 // pred_fallthru
      _
    // Predicated region
    $region18: #{tpu_custom_call.1} parent=1 // pred_check
      _
    $region19: #{tpu_custom_call.1} parent=1 // pred_check_branch
      %70 = sbr.rel (0) target = $region21
    $region20: #{tpu_custom_call.1} parent=1 // pred_region
      _
    $region21: #{tpu_custom_call.1} parent=1 // pred_fallthru
      _
    // Predicated region
    $region22: #{tpu_custom_call.1} parent=1 // pred_check
      _
    $region23: #{tpu_custom_call.1} parent=1 // pred_check_branch
      %72 = sbr.rel (0) target = $region25
    $region24: #{tpu_custom_call.1} parent=1 // pred_region
      %74 = vsyncadd [#allocation9], 0
      %s75 = sshll.u32 %s5, 4
      %s76 = int_to_ptr.hbm [resolvable:$true] %s75
      %s77 = sshll.u32 [#allocation10], 4
      %s78 = int_to_ptr.vmem [resolvable:$true] %s77
      %83 = dma.hbm_to_vmem [thread:$0]  %s76, 2048, %s78, [#allocation9], 128, 128, 8
    $region25: #{tpu_custom_call.1} parent=1 // pred_fallthru
      _
    // Predicated region
    $region26: #{tpu_custom_call.1} parent=1 // pred_check
      _
    $region27: #{tpu_custom_call.1} parent=1 // pred_check_branch
      %85 = sbr.rel (0) target = $region29
    $region28: #{tpu_custom_call.1} parent=1 // pred_region
      _
    $region29: #{tpu_custom_call.1} parent=1 // pred_fallthru
      _
    // Predicated region
    $region30: #{tpu_custom_call.1} parent=1 // pred_check
      _
    $region31: #{tpu_custom_call.1} parent=1 // pred_check_branch
      %87 = sbr.rel (0) target = $region33
    $region32: #{tpu_custom_call.1} parent=1 // pred_region
      %89 = dma.done [#allocation3], 256
    $region33: #{tpu_custom_call.1} parent=1 // pred_fallthru
      _
    // Predicated region
    $region34: #{tpu_custom_call.1} parent=1 // pred_check
      _
    $region35: #{tpu_custom_call.1} parent=1 // pred_check_branch
      %91 = sbr.rel (0) target = $region37
    $region36: #{tpu_custom_call.1} parent=1 // pred_region
      %93 = dma.done [#allocation6], 4096
    $region37: #{tpu_custom_call.1} parent=1 // pred_fallthru
      _
    // Predicated region
    $region38: #{tpu_custom_call.1} parent=1 // pred_check
      _
    $region39: #{tpu_custom_call.1} parent=1 // pred_check_branch
      %95 = sbr.rel (0) target = $region41
    $region40: #{tpu_custom_call.1} parent=1 // pred_region
      %97 = dma.done [#allocation6], 32
    $region41: #{tpu_custom_call.1} parent=1 // pred_fallthru
      _
    // Predicated region
    $region42: #{tpu_custom_call.1} parent=1 // pred_check
      _
    $region43: #{tpu_custom_call.1} parent=1 // pred_check_branch
      %99 = sbr.rel (0) target = $region45
    $region44: #{tpu_custom_call.1} parent=1 // pred_region
      %101 = dma.done [#allocation9], 2048
    $region45: #{tpu_custom_call.1} parent=1 // pred_fallthru
      _
    // Predicated region
    $region46: #{tpu_custom_call.1} parent=1 // pred_check
      _
    $region47: #{tpu_custom_call.1} parent=1 // pred_check_branch
      %103 = sbr.rel (0) target = $region49
    $region48: #{tpu_custom_call.1} parent=1 // pred_region
      %105 = dma.done [#allocation9], 2048
    $region49: #{tpu_custom_call.1} parent=1 // pred_fallthru
      _
    %v106 = vld [vmem:[#allocation2] sm:$0xff]
    %v107 = vld [vmem:[#allocation2 + $0x8] sm:$0xff]
    %v108 = vld [vmem:[#allocation5] sm:$0xff]
    %v109 = vld [vmem:[#allocation5 + $0x8] sm:$0xff]
    %v110 = vld [vmem:[#allocation5 + $0x10] sm:$0xff]
    %v111 = vld [vmem:[#allocation5 + $0x18] sm:$0xff]
    %v112 = vld [vmem:[#allocation5 + $0x20] sm:$0xff]
    %v113 = vld [vmem:[#allocation5 + $0x28] sm:$0xff]
    %v114 = vld [vmem:[#allocation5 + $0x30] sm:$0xff]
    %v115 = vld [vmem:[#allocation5 + $0x38] sm:$0xff]
    %v116 = vld [vmem:[#allocation5 + $0x40] sm:$0xff]
    %v117 = vld [vmem:[#allocation5 + $0x48] sm:$0xff]
    %v118 = vld [vmem:[#allocation5 + $0x50] sm:$0xff]
    %v119 = vld [vmem:[#allocation5 + $0x58] sm:$0xff]
    %v120 = vld [vmem:[#allocation5 + $0x60] sm:$0xff]
    %v121 = vld [vmem:[#allocation5 + $0x68] sm:$0xff]
    %v122 = vld [vmem:[#allocation5 + $0x70] sm:$0xff]
    %v123 = vld [vmem:[#allocation5 + $0x78] sm:$0xff]
    %v124 = vld [vmem:[#allocation5 + $0x80] sm:$0xff]
    %v125 = vld [vmem:[#allocation5 + $0x88] sm:$0xff]
    %v126 = vld [vmem:[#allocation5 + $0x90] sm:$0xff]
    %v127 = vld [vmem:[#allocation5 + $0x98] sm:$0xff]
    %v128 = vld [vmem:[#allocation5 + $0xa0] sm:$0xff]
    %v129 = vld [vmem:[#allocation5 + $0xa8] sm:$0xff]
    %v130 = vld [vmem:[#allocation5 + $0xb0] sm:$0xff]
    %v131 = vld [vmem:[#allocation5 + $0xb8] sm:$0xff]
    %v132 = vld [vmem:[#allocation5 + $0xc0] sm:$0xff]
    %v133 = vld [vmem:[#allocation5 + $0xc8] sm:$0xff]
    %v134 = vld [vmem:[#allocation5 + $0xd0] sm:$0xff]
    %v135 = vld [vmem:[#allocation5 + $0xd8] sm:$0xff]
    %v136 = vld [vmem:[#allocation5 + $0xe0] sm:$0xff]
    %v137 = vld [vmem:[#allocation5 + $0xe8] sm:$0xff]
    %v138 = vld [vmem:[#allocation5 + $0xf0] sm:$0xff]
    %v139 = vld [vmem:[#allocation5 + $0xf8] sm:$0xff]
    %v140 = vld [vmem:[#allocation7] sm:$0x3]
    %v142 = vperm.slane %v140, 0
    %v143 = vperm.slane %v140, 1
    %146 = vmatpush.msra.mxu0 %v138
    %147 = vmatpush.msra.mxu0 %v136
    %148 = vmatpush.msra.mxu0 %v134
    %149 = vmatpush.msra.mxu0 %v132
    %150 = vmatpush.msra.mxu0 %v130
    %151 = vmatpush.msra.mxu0 %v128
    %152 = vmatpush.msra.mxu0 %v126
    %153 = vmatpush.msra.mxu0 %v124
    %154 = vmatpush.msra.mxu0 %v122
    %155 = vmatpush.msra.mxu0 %v120
    %156 = vmatpush.msra.mxu0 %v118
    %157 = vmatpush.msra.mxu0 %v116
    %158 = vmatpush.msra.mxu0 %v114
    %159 = vmatpush.msra.mxu0 %v112
    %160 = vmatpush.msra.mxu0 %v110
    %161 = vmatpush.msra.mxu0 %v108
    %162 = vmatmul.f32.gmra.mxu0 %v106
    %v163 = vpop.f32.mrf.mxu0
    %v164 = vadd.f32 %v142, %v163
    %165 = vmatmul.f32.gmra.mxu0 %v107
    %v166 = vpop.f32.mrf.mxu0
    %v167 = vadd.f32 %v142, %v166
    %168 = vdwg.mxu0
    %169 = vmatpush.msra.mxu0 %v139
    %170 = vmatpush.msra.mxu0 %v137
    %171 = vmatpush.msra.mxu0 %v135
    %172 = vmatpush.msra.mxu0 %v133
    %173 = vmatpush.msra.mxu0 %v131
    %174 = vmatpush.msra.mxu0 %v129
    %175 = vmatpush.msra.mxu0 %v127
    %176 = vmatpush.msra.mxu0 %v125
    %177 = vmatpush.msra.mxu0 %v123
    %178 = vmatpush.msra.mxu0 %v121
    %179 = vmatpush.msra.mxu0 %v119
    %180 = vmatpush.msra.mxu0 %v117
    %181 = vmatpush.msra.mxu0 %v115
    %182 = vmatpush.msra.mxu0 %v113
    %183 = vmatpush.msra.mxu0 %v111
    %184 = vmatpush.msra.mxu0 %v109
    %185 = vmatmul.f32.gmra.mxu0 %v106
    %v186 = vpop.f32.mrf.mxu0
    %v187 = vadd.f32 %v143, %v186
    %188 = vmatmul.f32.gmra.mxu0 %v107
    %v189 = vpop.f32.mrf.mxu0
    %v190 = vadd.f32 %v143, %v189
    %191 = vdwg.mxu0
    %192 = vst [vmem:[#allocation11] sm:$0xff] %v164
    %193 = vst [vmem:[#allocation11 + $0x8] sm:$0xff] %v167
    %v194 = vmax.f32 %v187, 0.0
    %v195 = vmax.f32 %v190, 0.0
    %v196 = vld [vmem:[#allocation8] sm:$0xff]
    %v197 = vld [vmem:[#allocation8 + $0x8] sm:$0xff]
    %v198 = vld [vmem:[#allocation8 + $0x10] sm:$0xff]
    %v199 = vld [vmem:[#allocation8 + $0x18] sm:$0xff]
    %v200 = vld [vmem:[#allocation8 + $0x20] sm:$0xff]
    %v201 = vld [vmem:[#allocation8 + $0x28] sm:$0xff]
    %v202 = vld [vmem:[#allocation8 + $0x30] sm:$0xff]
    %v203 = vld [vmem:[#allocation8 + $0x38] sm:$0xff]
    %v204 = vld [vmem:[#allocation8 + $0x40] sm:$0xff]
    %v205 = vld [vmem:[#allocation8 + $0x48] sm:$0xff]
    %v206 = vld [vmem:[#allocation8 + $0x50] sm:$0xff]
    %v207 = vld [vmem:[#allocation8 + $0x58] sm:$0xff]
    %v208 = vld [vmem:[#allocation8 + $0x60] sm:$0xff]
    %v209 = vld [vmem:[#allocation8 + $0x68] sm:$0xff]
    %v210 = vld [vmem:[#allocation8 + $0x70] sm:$0xff]
    %v211 = vld [vmem:[#allocation8 + $0x78] sm:$0xff]
    %v212 = vld [vmem:[%s4] sm:$0x1]
    %v214 = vperm.slane %v212, 0
    %216 = vmatpush.msra.mxu0 %v211
    %217 = vmatpush.msra.mxu0 %v210
    %218 = vmatpush.msra.mxu0 %v209
    %219 = vmatpush.msra.mxu0 %v208
    %220 = vmatpush.msra.mxu0 %v207
    %221 = vmatpush.msra.mxu0 %v206
    %222 = vmatpush.msra.mxu0 %v205
    %223 = vmatpush.msra.mxu0 %v204
    %224 = vmatpush.msra.mxu0 %v203
    %225 = vmatpush.msra.mxu0 %v202
    %226 = vmatpush.msra.mxu0 %v201
    %227 = vmatpush.msra.mxu0 %v200
    %228 = vmatpush.msra.mxu0 %v199
    %229 = vmatpush.msra.mxu0 %v198
    %230 = vmatpush.msra.mxu0 %v197
    %231 = vmatpush.msra.mxu0 %v196
    %232 = vmatmul.f32.gmra.mxu0 %v194
    %v233 = vpop.f32.mrf.mxu0
    %v234 = vadd.f32 %v214, %v233
    %235 = vmatmul.f32.gmra.mxu0 %v195
    %v236 = vpop.f32.mrf.mxu0
    %v237 = vadd.f32 %v214, %v236
    %238 = vdwg.mxu0
    %v239 = vmax.f32 %v234, 0.0
    %v240 = vmax.f32 %v237, 0.0
    %v241 = vld [vmem:[#allocation10] sm:$0xff]
    %v242 = vld [vmem:[#allocation10 + $0x8] sm:$0xff]
    %v243 = vld [vmem:[#allocation10 + $0x10] sm:$0xff]
    %v244 = vld [vmem:[#allocation10 + $0x18] sm:$0xff]
    %v245 = vld [vmem:[#allocation10 + $0x20] sm:$0xff]
    %v246 = vld [vmem:[#allocation10 + $0x28] sm:$0xff]
    %v247 = vld [vmem:[#allocation10 + $0x30] sm:$0xff]
    %v248 = vld [vmem:[#allocation10 + $0x38] sm:$0xff]
    %v249 = vld [vmem:[#allocation10 + $0x40] sm:$0xff]
    %v250 = vld [vmem:[#allocation10 + $0x48] sm:$0xff]
    %v251 = vld [vmem:[#allocation10 + $0x50] sm:$0xff]
    %v252 = vld [vmem:[#allocation10 + $0x58] sm:$0xff]
    %v253 = vld [vmem:[#allocation10 + $0x60] sm:$0xff]
    %v254 = vld [vmem:[#allocation10 + $0x68] sm:$0xff]
    %v255 = vld [vmem:[#allocation10 + $0x70] sm:$0xff]
    %v256 = vld [vmem:[#allocation10 + $0x78] sm:$0xff]
    %v257 = vld [vmem:[%s6] sm:$0x1]
    %v259 = vperm.slane %v257, 0
    %261 = vmatpush.msra.mxu0 %v256
    %262 = vmatpush.msra.mxu0 %v255
    %263 = vmatpush.msra.mxu0 %v254
    %264 = vmatpush.msra.mxu0 %v253
    %265 = vmatpush.msra.mxu0 %v252
    %266 = vmatpush.msra.mxu0 %v251
    %267 = vmatpush.msra.mxu0 %v250
    %268 = vmatpush.msra.mxu0 %v249
    %269 = vmatpush.msra.mxu0 %v248
    %270 = vmatpush.msra.mxu0 %v247
    %271 = vmatpush.msra.mxu0 %v246
    %272 = vmatpush.msra.mxu0 %v245
    %273 = vmatpush.msra.mxu0 %v244
    %274 = vmatpush.msra.mxu0 %v243
    %275 = vmatpush.msra.mxu0 %v242
    %276 = vmatpush.msra.mxu0 %v241
    %277 = vmatmul.f32.gmra.mxu0 %v239
    %v278 = vpop.f32.mrf.mxu0
    %v279 = vadd.f32 %v259, %v278
    %280 = vmatmul.f32.gmra.mxu0 %v240
    %v281 = vpop.f32.mrf.mxu0
    %v282 = vadd.f32 %v259, %v281
    %283 = vdwg.mxu0
    %v284 = vxor.u32 %v279, 2147483648
    %v285 = vxor.u32 %v282, 2147483648
    %v286 = vmul.f32 %v284, 1.442695
    %v287 = vpow.pop %v286
    %v288 = vmul.f32 %v285, 1.442695
    %v289 = vpow.pop %v288
    %v290 = vadd.f32 %v287, 1.0
    %v291 = vadd.f32 %v289, 1.0
    %v292 = vrcp.pop %v290
    %v293 = vmul.f32 %v290, %v292
    %v294 = vsub.f32 1.0, %v293
    %v295 = vmul.f32 %v292, %v294
    %v296 = vadd.f32 %v292, %v295
    %vm297 = vweird.f32 %v290
    %vm298 = vweird.f32 %v292
    %vm299 = vmor %vm297, %vm298
    %v300 = vsel %vm299, %v292, %v296
    %v301 = vand.u32 2147483647, %v290
    %vm302 = vcmp.eq.f32.partialorder %v301, 8.507059e+37
    %v303 = vand.u32 %v290, 2147483648
    %v304 = vor.u32 1.1754944e-38, %v303
    %v305 = vsel %vm302, %v304, %v300
    %v306 = vmul.f32 1.0, %v305
    %v307 = vrcp.pop %v291
    %v308 = vmul.f32 %v291, %v307
    %v309 = vsub.f32 1.0, %v308
    %v310 = vmul.f32 %v307, %v309
    %v311 = vadd.f32 %v307, %v310
    %vm312 = vweird.f32 %v291
    %vm313 = vweird.f32 %v307
    %vm314 = vmor %vm312, %vm313
    %v315 = vsel %vm314, %v307, %v311
    %v316 = vand.u32 2147483647, %v291
    %vm317 = vcmp.eq.f32.partialorder %v316, 8.507059e+37
    %v318 = vand.u32 %v291, 2147483648
    %v319 = vor.u32 1.1754944e-38, %v318
    %v320 = vsel %vm317, %v319, %v315
    %v321 = vmul.f32 1.0, %v320
    %322 = vst [vmem:[#allocation12] sm:$0xff] %v306
    %323 = vst [vmem:[#allocation12 + $0x8] sm:$0xff] %v321
    // Predicated region
    $region50: #{tpu_custom_call.1} parent=1 // pred_check
      _
    $region51: #{tpu_custom_call.1} parent=1 // pred_check_branch
      %325 = sbr.rel (0) target = $region53
    $region52: #{tpu_custom_call.1} parent=1 // pred_region
      %327 = vsyncadd [#allocation4], 0
      %s328 = sshll.u32 [#allocation11], 4
      %s329 = int_to_ptr.vmem [resolvable:$true] %s328
      %s330 = sshll.u32 %s7, 4
      %s331 = int_to_ptr.hbm [resolvable:$true] %s330
      %336 = dma.vmem_to_hbm [thread:$0]  %s329, 256, %s331, [#allocation4], 128, 128, 8
    $region53: #{tpu_custom_call.1} parent=1 // pred_fallthru
      _
    // Predicated region
    $region54: #{tpu_custom_call.1} parent=1 // pred_check
      _
    $region55: #{tpu_custom_call.1} parent=1 // pred_check_branch
      %338 = sbr.rel (0) target = $region57
    $region56: #{tpu_custom_call.1} parent=1 // pred_region
      %340 = vsyncadd [#allocation13], 0
      %s341 = sshll.u32 [#allocation12], 4
      %s342 = int_to_ptr.vmem [resolvable:$true] %s341
      %s343 = sshll.u32 %s8, 4
      %s344 = int_to_ptr.hbm [resolvable:$true] %s343
      %349 = dma.vmem_to_hbm [thread:$0]  %s342, 256, %s344, [#allocation13], 128, 128, 8
    $region57: #{tpu_custom_call.1} parent=1 // pred_fallthru
      _
    // Predicated region
    $region58: #{tpu_custom_call.1} parent=1 // pred_check
      _
    $region59: #{tpu_custom_call.1} parent=1 // pred_check_branch
      %351 = sbr.rel (0) target = $region61
    $region60: #{tpu_custom_call.1} parent=1 // pred_region
      %353 = dma.done [#allocation4], 256
    $region61: #{tpu_custom_call.1} parent=1 // pred_fallthru
      _
    // Predicated region
    $region62: #{tpu_custom_call.1} parent=1 // pred_check
      _
    $region63: #{tpu_custom_call.1} parent=1 // pred_check_branch
      %355 = sbr.rel (0) target = $region65
    $region64: #{tpu_custom_call.1} parent=1 // pred_region
      %357 = dma.done [#allocation13], 256
    $region65: #{tpu_custom_call.1} parent=1 // pred_fallthru
      _
    %358 = vsyncpa [#allocation3], 1
    %359 = vsyncpa [#allocation6], 1
    %360 = vsyncpa [#allocation9], 1
    %361 = vsyncpa [#allocation4], 1
    %362 = vsyncpa [#allocation13], 1

</llo_original>
